<compile_context>
chip_gen: v7x
topology: tpu7x:2x2x1
jax: 0.10.0
libtpu: 0.0.40
codegen_flags: <defaults>
</compile_context>

<pallas_src>
import numpy as np
import jax
import jax.numpy as jnp
from jax.experimental import pallas as pl
from jax.experimental.pallas import tpu as pltpu

# Module defaults (GranularGLS.__init__)
N_CLASSES = 5
AMPLIFIER = 50
NOISE = 0.25
ALPHA = 1.0
BETA = 1.0
N = N_CLASSES * AMPLIFIER  # 250 granular bins


def make_gauss_labels(seed: int = 0) -> np.ndarray:
    """Deterministic version of get_all_super_noisy_gauss_labels -> (5, 250)."""
    # TODO(synk): original module re-draws np.random / scipy noise every forward;
    # here the noisy distributions are generated once, deterministically, on host.
    rng = np.random.RandomState(seed)
    half_int = AMPLIFIER / 2.0
    xs = np.arange(N, dtype=np.float64)
    rows = []
    for label in range(N_CLASSES):
        noisy_int = rng.uniform(low=half_int / 4.0, high=3.0 * half_int / 4.0)
        label_noise = rng.uniform(low=-NOISE, high=NOISE)
        label_new = half_int + (label + label_noise) * AMPLIFIER
        pdf = np.exp(-0.5 * ((xs - label_new) / noisy_int) ** 2) / (
            noisy_int * np.sqrt(2.0 * np.pi)
        )
        pdf /= pdf.sum()
        rows.append(pdf)
    return np.stack(rows, axis=0).astype(np.float32)


def _granular_gls_kernel(logits_ref, labels_ref, tri_ref, gauss_ref, cumg_ref,
                         cumsq_ref, ce_ref, cdo_ref):
    logits = logits_ref[...]            # (TB, N) f32
    lbl = labels_ref[...]               # (TB, 1) int32
    tb, n = logits.shape
    n_classes = gauss_ref.shape[0]

    # ---- gather per-sample soft-label / cum-label rows (5-way masked select,
    #      replaces the old (B,250) ohe input and the ohe @ tri matmul) ----
    ohe = jnp.zeros_like(logits)
    cum_labels = jnp.zeros_like(logits)
    cl_sq = jnp.zeros((tb, 1), dtype=jnp.float32)
    for k in range(n_classes):                       # static, unrolled (5 iters)
        sel = (lbl == k).astype(jnp.float32)         # (TB, 1)
        ohe = ohe + sel * gauss_ref[k:k + 1, :]      # (TB, N)
        cum_labels = cum_labels + sel * cumg_ref[k:k + 1, :]
        cl_sq = cl_sq + sel * cumsq_ref[k:k + 1, :]  # (TB, 1)

    # ---- cross-entropy against the soft gaussian labels (log_softmax) ----
    m = jnp.max(logits, axis=1, keepdims=True)
    z = logits - m
    lse = jnp.log(jnp.sum(jnp.exp(z), axis=1, keepdims=True))
    logp = z - lse
    ce_ref[...] = jnp.sum(-logp * ohe, axis=1, keepdims=True)     # (TB, 1)

    # ---- numerically stable sigmoid + normalization ----
    e = jnp.exp(-jnp.abs(logits))
    sig = jnp.where(logits >= 0, 1.0 / (1.0 + e), e / (1.0 + e))
    probs = sig / jnp.sum(sig, axis=1, keepdims=True)

    # ---- cumsum along class axis == matmul with upper-triangular ones (MXU),
    #      tri is a resident VMEM block (constant index_map) ----
    cum_probs = jnp.clip(
        jnp.dot(probs, tri_ref[...], preferred_element_type=jnp.float32), 0.0, 1.0
    )

    # ---- dice loss on cumulative distributions ----
    inter = jnp.sum(cum_probs * cum_labels, axis=1, keepdims=True)
    union = jnp.sum(cum_probs * cum_probs, axis=1, keepdims=True) + cl_sq
    cdo_ref[...] = 1.0 - 2.0 * inter / union                      # (TB, 1)


def granular_gls(logits, labels, gauss_labels_np, alpha=ALPHA, beta=BETA):
    """logits: (B, N) float; labels: (B,) int; gauss_labels_np: (n_classes, N) np."""
    logits = logits.astype(jnp.float32)
    b, n = logits.shape
    nc = gauss_labels_np.shape[0]

    # Host-side precompute: label rows, cumulative rows, sum(cum^2) per class.
    g64 = np.asarray(gauss_labels_np, dtype=np.float64)
    cumg64 = np.cumsum(g64, axis=1)
    gauss_t = jnp.asarray(g64.astype(np.float32))                       # (nc, N)
    cumg_t = jnp.asarray(cumg64.astype(np.float32))                     # (nc, N)
    cumsq_t = jnp.asarray(
        np.sum(cumg64 * cumg64, axis=1, keepdims=True).astype(np.float32))  # (nc, 1)

    tri = jnp.triu(jnp.ones((n, n), dtype=jnp.float32))  # cumsum operator (resident)

    # Batch tiling: rows per tile multiple of 8, capped at 256 (MXU M on v6e/v7x).
    tb = min(256, ((b + 7) // 8) * 8)
    b_pad = ((b + tb - 1) // tb) * tb
    if b_pad != b:
        logits = jnp.pad(logits, ((0, b_pad - b), (0, 0)))
        labels = jnp.pad(labels, ((0, b_pad - b),))
    labels2d = labels.astype(jnp.int32).reshape(b_pad, 1)
    num_tiles = b_pad // tb

    ce_rows, cdo_rows = pl.pallas_call(
        _granular_gls_kernel,
        out_shape=(jax.ShapeDtypeStruct((b_pad, 1), jnp.float32),
                   jax.ShapeDtypeStruct((b_pad, 1), jnp.float32)),
        grid_spec=pltpu.PrefetchScalarGridSpec(
            num_scalar_prefetch=0,
            grid=(num_tiles,),
            in_specs=[
                pl.BlockSpec((tb, n), lambda i: (i, 0)),    # logits tile
                pl.BlockSpec((tb, 1), lambda i: (i, 0)),    # labels tile
                pl.BlockSpec((n, n), lambda i: (0, 0)),     # tri (resident)
                pl.BlockSpec((nc, n), lambda i: (0, 0)),    # gauss rows (resident)
                pl.BlockSpec((nc, n), lambda i: (0, 0)),    # cum gauss rows (resident)
                pl.BlockSpec((nc, 1), lambda i: (0, 0)),    # sum(cum^2) per class
            ],
            out_specs=[
                pl.BlockSpec((tb, 1), lambda i: (i, 0)),    # per-row CE
                pl.BlockSpec((tb, 1), lambda i: (i, 0)),    # per-row dice loss
            ],
        ),
        compiler_params=pltpu.CompilerParams(
            dimension_semantics=("parallel",),              # shard tiles on v7x 2 TCs
            vmem_limit_bytes=32 * 1024 * 1024,              # explicit, safe on v7x
        ),
    )(logits, labels2d, tri, gauss_t, cumg_t, cumsq_t)

    # Final mean over the true batch size (padded rows discarded).
    loss_ce = jnp.mean(ce_rows[:b, 0])
    loss_cdo = jnp.mean(cdo_rows[:b, 0])
    return alpha * loss_ce + beta * loss_cdo


def _reference(logits, ohe):
    """Pure-JAX reference mirroring the PyTorch forward (defaults)."""
    logp = jax.nn.log_softmax(logits, axis=1)
    ce = jnp.sum(-logp * ohe, axis=1).mean()
    cum_labels = jnp.cumsum(ohe, axis=1)
    sig = jax.nn.sigmoid(logits)
    probs = sig / jnp.sum(sig, axis=1, keepdims=True)
    cum_probs = jnp.clip(jnp.cumsum(probs, axis=1), 0.0, 1.0)
    inter = jnp.sum(cum_probs * cum_labels, axis=1)
    union = jnp.sum(cum_probs ** 2, axis=1) + jnp.sum(cum_labels ** 2, axis=1)
    cdo = 1.0 - 2.0 * inter / union
    return ALPHA * ce + BETA * cdo.mean()


if __name__ == "__main__":
    key = jax.random.PRNGKey(0)
    k1, k2 = jax.random.split(key)

    B = 8
    logits = jax.random.normal(k1, (B, N), dtype=jnp.float32)
    labels = jax.random.randint(k2, (B,), 0, N_CLASSES)

    # deterministic noisy gaussian label distributions (host-side glue)
    gauss_np = make_gauss_labels(seed=0)                       # (5, 250)

    out = granular_gls(logits, labels, gauss_np)
    out = jax.block_until_ready(out)

    ohe_labels = jnp.asarray(gauss_np)[labels]                 # (B, 250) for ref only
    ref = jax.block_until_ready(_reference(logits, ohe_labels))
    np.testing.assert_allclose(np.asarray(out), np.asarray(ref), rtol=1e-4, atol=1e-5)

    print("KERNEL_OK")
</pallas_src>

<mosaic_0001>
module attributes {stable_mosaic.version = 11 : i64} {
  func.func @_granular_gls_kernel(%arg0: i32, %arg1: memref<8x250xf32, #tpu.memory_space<vmem>>, %arg2: memref<8x1xi32, #tpu.memory_space<vmem>>, %arg3: memref<250x250xf32, #tpu.memory_space<vmem>>, %arg4: memref<5x250xf32, #tpu.memory_space<vmem>>, %arg5: memref<5x250xf32, #tpu.memory_space<vmem>>, %arg6: memref<5x1xf32, #tpu.memory_space<vmem>>, %arg7: memref<8x1xf32, #tpu.memory_space<vmem>>, %arg8: memref<8x1xf32, #tpu.memory_space<vmem>>) attributes {dimension_semantics = [#tpu.dimension_semantics<parallel>], iteration_bounds = array<i64: 1>, scalar_prefetch = 0 : i64, scratch_operands = 0 : i64, tpu.core_type = #tpu.core_type<tc>, window_params = [{transform_indices = @transform_0, window_bounds = array<i64: 8, 250>}, {transform_indices = @transform_1, window_bounds = array<i64: 8, 1>}, {pipeline_mode = #tpu.pipeline_mode<synchronous>, transform_indices = @transform_2, window_bounds = array<i64: 250, 250>}, {pipeline_mode = #tpu.pipeline_mode<synchronous>, transform_indices = @transform_3, window_bounds = array<i64: 5, 250>}, {pipeline_mode = #tpu.pipeline_mode<synchronous>, transform_indices = @transform_4, window_bounds = array<i64: 5, 250>}, {pipeline_mode = #tpu.pipeline_mode<synchronous>, transform_indices = @transform_5, window_bounds = array<i64: 5, 1>}, {transform_indices = @transform_6, window_bounds = array<i64: 8, 1>}, {transform_indices = @transform_7, window_bounds = array<i64: 8, 1>}]} {
    %c0 = arith.constant 0 : index
    %c0_0 = arith.constant 0 : index
    %0 = vector.load %arg1[%c0, %c0_0] : memref<8x250xf32, #tpu.memory_space<vmem>>, vector<8x250xf32>
    %c0_1 = arith.constant 0 : index
    %c0_2 = arith.constant 0 : index
    %1 = vector.load %arg2[%c0_1, %c0_2] : memref<8x1xi32, #tpu.memory_space<vmem>>, vector<8x1xi32>
    %cst = arith.constant 0.000000e+00 : f32
    %2 = vector.broadcast %cst : f32 to vector<8x250xf32>
    %cst_3 = arith.constant 0.000000e+00 : f32
    %3 = vector.broadcast %cst_3 : f32 to vector<8x250xf32>
    %cst_4 = arith.constant 0.000000e+00 : f32
    %4 = vector.broadcast %cst_4 : f32 to vector<8x1xf32>
    %c0_i32 = arith.constant 0 : i32
    %5 = vector.broadcast %c0_i32 : i32 to vector<8x1xi32>
    %6 = arith.cmpi eq, %1, %5 : vector<8x1xi32>
    %7 = arith.extui %6 : vector<8x1xi1> to vector<8x1xi32>
    %8 = arith.sitofp %7 : vector<8x1xi32> to vector<8x1xf32>
    %c0_5 = arith.constant 0 : index
    %c0_6 = arith.constant 0 : index
    %9 = vector.load %arg4[%c0_5, %c0_6] : memref<5x250xf32, #tpu.memory_space<vmem>>, vector<1x250xf32>
    %10 = vector.broadcast %8 : vector<8x1xf32> to vector<8x250xf32>
    %11 = vector.broadcast %9 : vector<1x250xf32> to vector<8x250xf32>
    %12 = arith.mulf %10, %11 : vector<8x250xf32>
    %13 = arith.addf %2, %12 : vector<8x250xf32>
    %c0_7 = arith.constant 0 : index
    %c0_8 = arith.constant 0 : index
    %14 = vector.load %arg5[%c0_7, %c0_8] : memref<5x250xf32, #tpu.memory_space<vmem>>, vector<1x250xf32>
    %15 = vector.broadcast %8 : vector<8x1xf32> to vector<8x250xf32>
    %16 = vector.broadcast %14 : vector<1x250xf32> to vector<8x250xf32>
    %17 = arith.mulf %15, %16 : vector<8x250xf32>
    %18 = arith.addf %3, %17 : vector<8x250xf32>
    %c0_9 = arith.constant 0 : index
    %c0_10 = arith.constant 0 : index
    %19 = vector.load %arg6[%c0_9, %c0_10] : memref<5x1xf32, #tpu.memory_space<vmem>>, vector<1x1xf32>
    %20 = vector.broadcast %19 : vector<1x1xf32> to vector<8x1xf32>
    %21 = arith.mulf %8, %20 : vector<8x1xf32>
    %22 = arith.addf %4, %21 : vector<8x1xf32>
    %c1_i32 = arith.constant 1 : i32
    %23 = vector.broadcast %c1_i32 : i32 to vector<8x1xi32>
    %24 = arith.cmpi eq, %1, %23 : vector<8x1xi32>
    %25 = arith.extui %24 : vector<8x1xi1> to vector<8x1xi32>
    %26 = arith.sitofp %25 : vector<8x1xi32> to vector<8x1xf32>
    %c1 = arith.constant 1 : index
    %c0_11 = arith.constant 0 : index
    %27 = vector.load %arg4[%c1, %c0_11] : memref<5x250xf32, #tpu.memory_space<vmem>>, vector<1x250xf32>
    %28 = vector.broadcast %26 : vector<8x1xf32> to vector<8x250xf32>
    %29 = vector.broadcast %27 : vector<1x250xf32> to vector<8x250xf32>
    %30 = arith.mulf %28, %29 : vector<8x250xf32>
    %31 = arith.addf %13, %30 : vector<8x250xf32>
    %c1_12 = arith.constant 1 : index
    %c0_13 = arith.constant 0 : index
    %32 = vector.load %arg5[%c1_12, %c0_13] : memref<5x250xf32, #tpu.memory_space<vmem>>, vector<1x250xf32>
    %33 = vector.broadcast %26 : vector<8x1xf32> to vector<8x250xf32>
    %34 = vector.broadcast %32 : vector<1x250xf32> to vector<8x250xf32>
    %35 = arith.mulf %33, %34 : vector<8x250xf32>
    %36 = arith.addf %18, %35 : vector<8x250xf32>
    %c1_14 = arith.constant 1 : index
    %c0_15 = arith.constant 0 : index
    %37 = vector.load %arg6[%c1_14, %c0_15] : memref<5x1xf32, #tpu.memory_space<vmem>>, vector<1x1xf32>
    %38 = vector.broadcast %37 : vector<1x1xf32> to vector<8x1xf32>
    %39 = arith.mulf %26, %38 : vector<8x1xf32>
    %40 = arith.addf %22, %39 : vector<8x1xf32>
    %c2_i32 = arith.constant 2 : i32
    %41 = vector.broadcast %c2_i32 : i32 to vector<8x1xi32>
    %42 = arith.cmpi eq, %1, %41 : vector<8x1xi32>
    %43 = arith.extui %42 : vector<8x1xi1> to vector<8x1xi32>
    %44 = arith.sitofp %43 : vector<8x1xi32> to vector<8x1xf32>
    %c2 = arith.constant 2 : index
    %c0_16 = arith.constant 0 : index
    %45 = vector.load %arg4[%c2, %c0_16] : memref<5x250xf32, #tpu.memory_space<vmem>>, vector<1x250xf32>
    %46 = vector.broadcast %44 : vector<8x1xf32> to vector<8x250xf32>
    %47 = vector.broadcast %45 : vector<1x250xf32> to vector<8x250xf32>
    %48 = arith.mulf %46, %47 : vector<8x250xf32>
    %49 = arith.addf %31, %48 : vector<8x250xf32>
    %c2_17 = arith.constant 2 : index
    %c0_18 = arith.constant 0 : index
    %50 = vector.load %arg5[%c2_17, %c0_18] : memref<5x250xf32, #tpu.memory_space<vmem>>, vector<1x250xf32>
    %51 = vector.broadcast %44 : vector<8x1xf32> to vector<8x250xf32>
    %52 = vector.broadcast %50 : vector<1x250xf32> to vector<8x250xf32>
    %53 = arith.mulf %51, %52 : vector<8x250xf32>
    %54 = arith.addf %36, %53 : vector<8x250xf32>
    %c2_19 = arith.constant 2 : index
    %c0_20 = arith.constant 0 : index
    %55 = vector.load %arg6[%c2_19, %c0_20] : memref<5x1xf32, #tpu.memory_space<vmem>>, vector<1x1xf32>
    %56 = vector.broadcast %55 : vector<1x1xf32> to vector<8x1xf32>
    %57 = arith.mulf %44, %56 : vector<8x1xf32>
    %58 = arith.addf %40, %57 : vector<8x1xf32>
    %c3_i32 = arith.constant 3 : i32
    %59 = vector.broadcast %c3_i32 : i32 to vector<8x1xi32>
    %60 = arith.cmpi eq, %1, %59 : vector<8x1xi32>
    %61 = arith.extui %60 : vector<8x1xi1> to vector<8x1xi32>
    %62 = arith.sitofp %61 : vector<8x1xi32> to vector<8x1xf32>
    %c3 = arith.constant 3 : index
    %c0_21 = arith.constant 0 : index
    %63 = vector.load %arg4[%c3, %c0_21] : memref<5x250xf32, #tpu.memory_space<vmem>>, vector<1x250xf32>
    %64 = vector.broadcast %62 : vector<8x1xf32> to vector<8x250xf32>
    %65 = vector.broadcast %63 : vector<1x250xf32> to vector<8x250xf32>
    %66 = arith.mulf %64, %65 : vector<8x250xf32>
    %67 = arith.addf %49, %66 : vector<8x250xf32>
    %c3_22 = arith.constant 3 : index
    %c0_23 = arith.constant 0 : index
    %68 = vector.load %arg5[%c3_22, %c0_23] : memref<5x250xf32, #tpu.memory_space<vmem>>, vector<1x250xf32>
    %69 = vector.broadcast %62 : vector<8x1xf32> to vector<8x250xf32>
    %70 = vector.broadcast %68 : vector<1x250xf32> to vector<8x250xf32>
    %71 = arith.mulf %69, %70 : vector<8x250xf32>
    %72 = arith.addf %54, %71 : vector<8x250xf32>
    %c3_24 = arith.constant 3 : index
    %c0_25 = arith.constant 0 : index
    %73 = vector.load %arg6[%c3_24, %c0_25] : memref<5x1xf32, #tpu.memory_space<vmem>>, vector<1x1xf32>
    %74 = vector.broadcast %73 : vector<1x1xf32> to vector<8x1xf32>
    %75 = arith.mulf %62, %74 : vector<8x1xf32>
    %76 = arith.addf %58, %75 : vector<8x1xf32>
    %c4_i32 = arith.constant 4 : i32
    %77 = vector.broadcast %c4_i32 : i32 to vector<8x1xi32>
    %78 = arith.cmpi eq, %1, %77 : vector<8x1xi32>
    %79 = arith.extui %78 : vector<8x1xi1> to vector<8x1xi32>
    %80 = arith.sitofp %79 : vector<8x1xi32> to vector<8x1xf32>
    %c4 = arith.constant 4 : index
    %c0_26 = arith.constant 0 : index
    %81 = vector.load %arg4[%c4, %c0_26] : memref<5x250xf32, #tpu.memory_space<vmem>>, vector<1x250xf32>
    %82 = vector.broadcast %80 : vector<8x1xf32> to vector<8x250xf32>
    %83 = vector.broadcast %81 : vector<1x250xf32> to vector<8x250xf32>
    %84 = arith.mulf %82, %83 : vector<8x250xf32>
    %85 = arith.addf %67, %84 : vector<8x250xf32>
    %c4_27 = arith.constant 4 : index
    %c0_28 = arith.constant 0 : index
    %86 = vector.load %arg5[%c4_27, %c0_28] : memref<5x250xf32, #tpu.memory_space<vmem>>, vector<1x250xf32>
    %87 = vector.broadcast %80 : vector<8x1xf32> to vector<8x250xf32>
    %88 = vector.broadcast %86 : vector<1x250xf32> to vector<8x250xf32>
    %89 = arith.mulf %87, %88 : vector<8x250xf32>
    %90 = arith.addf %72, %89 : vector<8x250xf32>
    %c4_29 = arith.constant 4 : index
    %c0_30 = arith.constant 0 : index
    %91 = vector.load %arg6[%c4_29, %c0_30] : memref<5x1xf32, #tpu.memory_space<vmem>>, vector<1x1xf32>
    %92 = vector.broadcast %91 : vector<1x1xf32> to vector<8x1xf32>
    %93 = arith.mulf %80, %92 : vector<8x1xf32>
    %94 = arith.addf %76, %93 : vector<8x1xf32>
    %cst_31 = arith.constant dense<0xFF800000> : vector<8xf32>
    %95 = vector.multi_reduction <maximumf>, %0, %cst_31 [1] : vector<8x250xf32> to vector<8xf32>
    %96 = vector.shape_cast %95 : vector<8xf32> to vector<8x1xf32>
    %97 = vector.broadcast %96 : vector<8x1xf32> to vector<8x250xf32>
    %98 = arith.subf %0, %97 : vector<8x250xf32>
    %99 = math.exp %98 : vector<8x250xf32>
    %cst_32 = arith.constant dense<0.000000e+00> : vector<8xf32>
    %100 = vector.multi_reduction <add>, %99, %cst_32 [1] : vector<8x250xf32> to vector<8xf32>
    %101 = vector.shape_cast %100 : vector<8xf32> to vector<8x1xf32>
    %102 = math.log %101 : vector<8x1xf32>
    %103 = vector.broadcast %102 : vector<8x1xf32> to vector<8x250xf32>
    %104 = arith.subf %98, %103 : vector<8x250xf32>
    %cst_33 = arith.constant 0.000000e+00 : f32
    %105 = vector.broadcast %cst_33 : f32 to vector<8x250xf32>
    %106 = arith.subf %105, %104 : vector<8x250xf32>
    %107 = arith.mulf %106, %85 : vector<8x250xf32>
    %cst_34 = arith.constant dense<0.000000e+00> : vector<8xf32>
    %108 = vector.multi_reduction <add>, %107, %cst_34 [1] : vector<8x250xf32> to vector<8xf32>
    %109 = vector.shape_cast %108 : vector<8xf32> to vector<8x1xf32>
    %c0_35 = arith.constant 0 : index
    %c0_36 = arith.constant 0 : index
    %110 = vector.load %arg7[%c0_35, %c0_36] : memref<8x1xf32, #tpu.memory_space<vmem>>, vector<8x1xf32>
    tpu.vector_store %arg7[%c0_35, %c0_36], %109 {strides = array<i32>} : memref<8x1xf32, #tpu.memory_space<vmem>>, vector<8x1xf32>,
    %111 = math.absf %0 : vector<8x250xf32>
    %cst_37 = arith.constant 0.000000e+00 : f32
    %112 = vector.broadcast %cst_37 : f32 to vector<8x250xf32>
    %113 = arith.subf %112, %111 : vector<8x250xf32>
    %114 = math.exp %113 : vector<8x250xf32>
    %cst_38 = arith.constant 0.000000e+00 : f32
    %115 = vector.broadcast %cst_38 : f32 to vector<8x250xf32>
    %116 = arith.cmpf oge, %0, %115 : vector<8x250xf32>
    %cst_39 = arith.constant 1.000000e+00 : f32
    %117 = vector.broadcast %cst_39 : f32 to vector<8x250xf32>
    %118 = arith.addf %117, %114 : vector<8x250xf32>
    %cst_40 = arith.constant 1.000000e+00 : f32
    %119 = vector.broadcast %cst_40 : f32 to vector<8x250xf32>
    %120 = arith.divf %119, %118 : vector<8x250xf32>
    %cst_41 = arith.constant 1.000000e+00 : f32
    %121 = vector.broadcast %cst_41 : f32 to vector<8x250xf32>
    %122 = arith.addf %121, %114 : vector<8x250xf32>
    %123 = arith.divf %114, %122 : vector<8x250xf32>
    %124 = arith.select %116, %120, %123 : vector<8x250xi1>, vector<8x250xf32>
    %cst_42 = arith.constant dense<0.000000e+00> : vector<8xf32>
    %125 = vector.multi_reduction <add>, %124, %cst_42 [1] : vector<8x250xf32> to vector<8xf32>
    %126 = vector.shape_cast %125 : vector<8xf32> to vector<8x1xf32>
    %127 = vector.broadcast %126 : vector<8x1xf32> to vector<8x250xf32>
    %128 = arith.divf %124, %127 : vector<8x250xf32>
    %c0_43 = arith.constant 0 : index
    %c0_44 = arith.constant 0 : index
    %129 = vector.load %arg3[%c0_43, %c0_44] : memref<250x250xf32, #tpu.memory_space<vmem>>, vector<250x250xf32>
    %cst_45 = arith.constant dense<0.000000e+00> : vector<8x250xf32>
    %130 = tpu.matmul %128, %129, %cst_45 {dimension_numbers = #tpu.dot_dimension_numbers<[1], [0], [0], [1], [0, 0, 1, 1], [], []>} : vector<8x250xf32>, vector<250x250xf32>, vector<8x250xf32> -> vector<8x250xf32>
    %cst_46 = arith.constant 0.000000e+00 : f32
    %cst_47 = arith.constant 1.000000e+00 : f32
    %131 = vector.broadcast %cst_46 : f32 to vector<8x250xf32>
    %132 = arith.maximumf %131, %130 : vector<8x250xf32>
    %133 = vector.broadcast %cst_47 : f32 to vector<8x250xf32>
    %134 = arith.minimumf %133, %132 : vector<8x250xf32>
    %135 = arith.mulf %134, %90 : vector<8x250xf32>
    %cst_48 = arith.constant dense<0.000000e+00> : vector<8xf32>
    %136 = vector.multi_reduction <add>, %135, %cst_48 [1] : vector<8x250xf32> to vector<8xf32>
    %137 = vector.shape_cast %136 : vector<8xf32> to vector<8x1xf32>
    %138 = arith.mulf %134, %134 : vector<8x250xf32>
    %cst_49 = arith.constant dense<0.000000e+00> : vector<8xf32>
    %139 = vector.multi_reduction <add>, %138, %cst_49 [1] : vector<8x250xf32> to vector<8xf32>
    %140 = vector.shape_cast %139 : vector<8xf32> to vector<8x1xf32>
    %141 = arith.addf %140, %94 : vector<8x1xf32>
    %cst_50 = arith.constant 2.000000e+00 : f32
    %142 = vector.broadcast %cst_50 : f32 to vector<8x1xf32>
    %143 = arith.mulf %142, %137 : vector<8x1xf32>
    %144 = arith.divf %143, %141 : vector<8x1xf32>
    %cst_51 = arith.constant 1.000000e+00 : f32
    %145 = vector.broadcast %cst_51 : f32 to vector<8x1xf32>
    %146 = arith.subf %145, %144 : vector<8x1xf32>
    %c0_52 = arith.constant 0 : index
    %c0_53 = arith.constant 0 : index
    %147 = vector.load %arg8[%c0_52, %c0_53] : memref<8x1xf32, #tpu.memory_space<vmem>>, vector<8x1xf32>
    tpu.vector_store %arg8[%c0_52, %c0_53], %146 {strides = array<i32>} : memref<8x1xf32, #tpu.memory_space<vmem>>, vector<8x1xf32>,
    return
  }
  func.func @transform_0(%arg0: i32) -> (i32, i32) {
    %c0_i32 = arith.constant 0 : i32
    %c0_i32_0 = arith.constant 0 : i32
    return %arg0, %c0_i32 : i32, i32
  }
  func.func @transform_1(%arg0: i32) -> (i32, i32) {
    %c0_i32 = arith.constant 0 : i32
    %c0_i32_0 = arith.constant 0 : i32
    return %arg0, %c0_i32 : i32, i32
  }
  func.func @transform_2(%arg0: i32) -> (i32, i32) {
    %c0_i32 = arith.constant 0 : i32
    %c0_i32_0 = arith.constant 0 : i32
    %c0_i32_1 = arith.constant 0 : i32
    return %c0_i32, %c0_i32_0 : i32, i32
  }
  func.func @transform_3(%arg0: i32) -> (i32, i32) {
    %c0_i32 = arith.constant 0 : i32
    %c0_i32_0 = arith.constant 0 : i32
    %c0_i32_1 = arith.constant 0 : i32
    return %c0_i32, %c0_i32_0 : i32, i32
  }
  func.func @transform_4(%arg0: i32) -> (i32, i32) {
    %c0_i32 = arith.constant 0 : i32
    %c0_i32_0 = arith.constant 0 : i32
    %c0_i32_1 = arith.constant 0 : i32
    return %c0_i32, %c0_i32_0 : i32, i32
  }
  func.func @transform_5(%arg0: i32) -> (i32, i32) {
    %c0_i32 = arith.constant 0 : i32
    %c0_i32_0 = arith.constant 0 : i32
    %c0_i32_1 = arith.constant 0 : i32
    return %c0_i32, %c0_i32_0 : i32, i32
  }
  func.func @transform_6(%arg0: i32) -> (i32, i32) {
    %c0_i32 = arith.constant 0 : i32
    %c0_i32_0 = arith.constant 0 : i32
    return %arg0, %c0_i32 : i32, i32
  }
  func.func @transform_7(%arg0: i32) -> (i32, i32) {
    %c0_i32 = arith.constant 0 : i32
    %c0_i32_0 = arith.constant 0 : i32
    return %arg0, %c0_i32 : i32, i32
  }
}

</mosaic_0001>

<llo_original>
// kernel: tpu_custom_call.1
$region0: #{tpu_custom_call.1}
  #allocation0 [shape = 'u32[]', space=smem, size = 0x4, offset = 0x4, fixed_abs, tag = 'smem constant byte address 0x4 - core index']
  #allocation1 [shape = 'u32[144,128]{1,0:T(1,128)}', space=vmem, size = 0x12000, scoped, tag = 'internal scratch']
  %s0 = inlined_call_operand.vmem [shape: f32[8,250], index: 0, kind: input, shape index: {}]
  %s1 = inlined_call_operand.vmem [shape: s32[8,1], index: 1, kind: input, shape index: {}]
  %s2 = inlined_call_operand.hbm [shape: f32[250,250], index: 2, kind: input, shape index: {}]
  %s3 = inlined_call_operand.hbm [shape: f32[5,250], index: 3, kind: input, shape index: {}]
  %s4 = inlined_call_operand.vmem [shape: f32[5,250], index: 4, kind: input, shape index: {}]
  %s5 = inlined_call_operand.vmem [shape: f32[5,1], index: 5, kind: input, shape index: {}]
  %s6 = inlined_call_operand.vmem [shape: f32[8,1], index: 6, kind: output, shape index: {0}]
  %s7 = inlined_call_operand.vmem [shape: f32[8,1], index: 7, kind: output, shape index: {1}]
  %8 = xla_tuple %s6, %s7
  %s9 = sld [smem:[#allocation0]]
  $region50: #{tpu_custom_call.1} parent=0
    _
  %s11 = ssub.s32 1, %s9
  %s12 = scalar_select 0, %s11, %s9
  $region1: #{tpu_custom_call.1} parent=0
    #allocation2 [shape = 'u8[262144]{0}', space=vmem, size = 0x40000, scoped, tag = 'input window, operand 2, single buffered']
    #allocation3 [shape = 's32[1]{0}', space=sflag, size = 0x4, scoped, tag = 'scoped memory for tpu_custom_call.1']
    #allocation4 [shape = 'u8[8192]{0}', space=vmem, size = 0x2000, scoped, tag = 'input window, operand 3, single buffered']
    #allocation5 [shape = 's32[1]{0}', space=sflag, size = 0x4, scoped, tag = 'scoped memory for tpu_custom_call.1']
    %13 = vsyncpa [#allocation3], 0
    %14 = vsyncpa [#allocation5], 0
    // Predicated region
    $region2: #{tpu_custom_call.1} parent=1 // pred_check
      _
    $region3: #{tpu_custom_call.1} parent=1 // pred_check_branch
      %16 = sbr.rel (0) target = $region5
    $region4: #{tpu_custom_call.1} parent=1 // pred_region
      _
    $region5: #{tpu_custom_call.1} parent=1 // pred_fallthru
      _
    // Predicated region
    $region6: #{tpu_custom_call.1} parent=1 // pred_check
      _
    $region7: #{tpu_custom_call.1} parent=1 // pred_check_branch
      %18 = sbr.rel (0) target = $region9
    $region8: #{tpu_custom_call.1} parent=1 // pred_region
      _
    $region9: #{tpu_custom_call.1} parent=1 // pred_fallthru
      _
    // Predicated region
    $region10: #{tpu_custom_call.1} parent=1 // pred_check
      _
    $region11: #{tpu_custom_call.1} parent=1 // pred_check_branch
      %20 = sbr.rel (0) target = $region13
    $region12: #{tpu_custom_call.1} parent=1 // pred_region
      %s22 = ssub.s32 8192, 8192
      %23 = vsyncadd [#allocation3], %s22
      %s24 = sshll.u32 [#allocation2], 4
      %s25 = int_to_ptr.vmem [resolvable:$true] %s24
      %30 = dma.hbm_to_vmem [thread:$0]  %s2, 8192, %s25, [#allocation3], 256, 256, 16
    $region13: #{tpu_custom_call.1} parent=1 // pred_fallthru
      _
    // Predicated region
    $region14: #{tpu_custom_call.1} parent=1 // pred_check
      _
    $region15: #{tpu_custom_call.1} parent=1 // pred_check_branch
      %32 = sbr.rel (0) target = $region17
    $region16: #{tpu_custom_call.1} parent=1 // pred_region
      %s34 = ssub.s32 256, 256
      %35 = vsyncadd [#allocation5], %s34
      %s37 = sshll.u32 [#allocation4], 4
      %s38 = int_to_ptr.vmem [resolvable:$true] %s37
      %40 = dma.hbm_to_vmem [thread:$0]  %s3, 256, %s38, [#allocation5]
    $region17: #{tpu_custom_call.1} parent=1 // pred_fallthru
      _
    // Predicated region
    $region18: #{tpu_custom_call.1} parent=1 // pred_check
      _
    $region19: #{tpu_custom_call.1} parent=1 // pred_check_branch
      %42 = sbr.rel (0) target = $region21
    $region20: #{tpu_custom_call.1} parent=1 // pred_region
      _
    $region21: #{tpu_custom_call.1} parent=1 // pred_fallthru
      _
    // Predicated region
    $region22: #{tpu_custom_call.1} parent=1 // pred_check
      _
    $region23: #{tpu_custom_call.1} parent=1 // pred_check_branch
      %44 = sbr.rel (0) target = $region25
    $region24: #{tpu_custom_call.1} parent=1 // pred_region
      _
    $region25: #{tpu_custom_call.1} parent=1 // pred_fallthru
      _
    // Predicated region
    $region26: #{tpu_custom_call.1} parent=1 // pred_check
      _
    $region27: #{tpu_custom_call.1} parent=1 // pred_check_branch
      %46 = sbr.rel (0) target = $region29
    $region28: #{tpu_custom_call.1} parent=1 // pred_region
      %47 = dma.done [#allocation3], 8192
    $region29: #{tpu_custom_call.1} parent=1 // pred_fallthru
      _
    // Predicated region
    $region30: #{tpu_custom_call.1} parent=1 // pred_check
      _
    $region31: #{tpu_custom_call.1} parent=1 // pred_check_branch
      %49 = sbr.rel (0) target = $region33
    $region32: #{tpu_custom_call.1} parent=1 // pred_region
      %50 = dma.done [#allocation5], 256
    $region33: #{tpu_custom_call.1} parent=1 // pred_fallthru
      _
    %v51 = vld [vmem:[%s0] sm:$0xff]
    %v52 = vld [vmem:[%s0 + $0x8] sm:$0xff]
    %v53 = vld [vmem:[%s1] sm:$0xff]
    %vm54 = vcmp.eq.s32.totalorder %v53, 0
    %v55 = vsel %vm54, 1, 0
    %v56 = vcvt.s32.f32 %v55
    %v57 = vld [vmem:[#allocation4] ss:$8 sm:$0x3]
    %59 = vset.pattern.permute.xlu0 0
    %60 = vperm.xlu0 %59, %v56
    %v61 = vpop.permute.xlu0 %60
    %v64 = vlaneseq
    %v65 = vshrl.u32 %v64, 7
    %v66 = vsub.s32 0, %v65
    %v67 = vrot.slane %v57, %v66
    %v68 = vlaneseq
    %v69 = vshrl.u32 %v68, 7
    %v70 = vsub.s32 1, %v69
    %v71 = vrot.slane %v57, %v70
    %v74 = vmul.f32 %v61, %v67
    %v75 = vmul.f32 %v61, %v71
    %v76 = vadd.f32 %v74, 0.0
    %v77 = vadd.f32 %v75, 0.0
    %v78 = vld [vmem:[%s4] ss:$8 sm:$0x3]
    %v80 = vlaneseq
    %v81 = vshrl.u32 %v80, 7
    %v82 = vsub.s32 0, %v81
    %v83 = vrot.slane %v78, %v82
    %v84 = vlaneseq
    %v85 = vshrl.u32 %v84, 7
    %v86 = vsub.s32 1, %v85
    %v87 = vrot.slane %v78, %v86
    %v90 = vmul.f32 %v61, %v83
    %v91 = vmul.f32 %v61, %v87
    %v92 = vadd.f32 %v90, 0.0
    %v93 = vadd.f32 %v91, 0.0
    %v94 = vld [vmem:[%s5] sm:$0x1]
    %v95 = vlaneseq
    %v96 = vshrl.u32 %v95, 7
    %v97 = vsub.s32 0, %v96
    %v98 = vrot.slane %v94, %v97
    %v99 = vmul.f32 %v56, %v98
    %v100 = vadd.f32 %v99, 0.0
    %vm101 = vcmp.eq.s32.totalorder %v53, 1
    %v102 = vsel %vm101, 1, 0
    %v103 = vcvt.s32.f32 %v102
    %s104 = scalar_lea.vmem [#allocation4], 1
    %v105 = vld [vmem:[%s104] ss:$8 sm:$0x3]
    %107 = vset.pattern.permute.xlu0 0
    %108 = vperm.xlu0 %107, %v103
    %v109 = vpop.permute.xlu0 %108
    %v112 = vlaneseq
    %v113 = vshrl.u32 %v112, 7
    %v114 = vsub.s32 0, %v113
    %v115 = vrot.slane %v105, %v114
    %v116 = vlaneseq
    %v117 = vshrl.u32 %v116, 7
    %v118 = vsub.s32 1, %v117
    %v119 = vrot.slane %v105, %v118
    %v122 = vmul.f32 %v109, %v115
    %v123 = vmul.f32 %v109, %v119
    %v124 = vadd.f32 %v76, %v122
    %v125 = vadd.f32 %v77, %v123
    %s126 = scalar_lea.vmem %s4, 1
    %v127 = vld [vmem:[%s126] ss:$8 sm:$0x3]
    %v129 = vlaneseq
    %v130 = vshrl.u32 %v129, 7
    %v131 = vsub.s32 0, %v130
    %v132 = vrot.slane %v127, %v131
    %v133 = vlaneseq
    %v134 = vshrl.u32 %v133, 7
    %v135 = vsub.s32 1, %v134
    %v136 = vrot.slane %v127, %v135
    %v139 = vmul.f32 %v109, %v132
    %v140 = vmul.f32 %v109, %v136
    %v141 = vadd.f32 %v92, %v139
    %v142 = vadd.f32 %v93, %v140
    %v143 = vld [vmem:[%s5 + $0x1] sm:$0x1]
    %v144 = vlaneseq
    %v145 = vshrl.u32 %v144, 7
    %v146 = vsub.s32 0, %v145
    %v147 = vrot.slane %v143, %v146
    %v148 = vmul.f32 %v103, %v147
    %v149 = vadd.f32 %v100, %v148
    %vm150 = vcmp.eq.s32.totalorder %v53, 2
    %v151 = vsel %vm150, 1, 0
    %v152 = vcvt.s32.f32 %v151
    %s153 = scalar_lea.vmem [#allocation4], 2
    %v154 = vld [vmem:[%s153] ss:$8 sm:$0x3]
    %156 = vset.pattern.permute.xlu0 0
    %157 = vperm.xlu0 %156, %v152
    %v158 = vpop.permute.xlu0 %157
    %v161 = vlaneseq
    %v162 = vshrl.u32 %v161, 7
    %v163 = vsub.s32 0, %v162
    %v164 = vrot.slane %v154, %v163
    %v165 = vlaneseq
    %v166 = vshrl.u32 %v165, 7
    %v167 = vsub.s32 1, %v166
    %v168 = vrot.slane %v154, %v167
    %v171 = vmul.f32 %v158, %v164
    %v172 = vmul.f32 %v158, %v168
    %v173 = vadd.f32 %v124, %v171
    %v174 = vadd.f32 %v125, %v172
    %s175 = scalar_lea.vmem %s4, 2
    %v176 = vld [vmem:[%s175] ss:$8 sm:$0x3]
    %v178 = vlaneseq
    %v179 = vshrl.u32 %v178, 7
    %v180 = vsub.s32 0, %v179
    %v181 = vrot.slane %v176, %v180
    %v182 = vlaneseq
    %v183 = vshrl.u32 %v182, 7
    %v184 = vsub.s32 1, %v183
    %v185 = vrot.slane %v176, %v184
    %v188 = vmul.f32 %v158, %v181
    %v189 = vmul.f32 %v158, %v185
    %v190 = vadd.f32 %v141, %v188
    %v191 = vadd.f32 %v142, %v189
    %v192 = vld [vmem:[%s5 + $0x2] sm:$0x1]
    %v193 = vlaneseq
    %v194 = vshrl.u32 %v193, 7
    %v195 = vsub.s32 0, %v194
    %v196 = vrot.slane %v192, %v195
    %v197 = vmul.f32 %v152, %v196
    %v198 = vadd.f32 %v149, %v197
    %vm199 = vcmp.eq.s32.totalorder %v53, 3
    %v200 = vsel %vm199, 1, 0
    %v201 = vcvt.s32.f32 %v200
    %s202 = scalar_lea.vmem [#allocation4], 3
    %v203 = vld [vmem:[%s202] ss:$8 sm:$0x3]
    %205 = vset.pattern.permute.xlu0 0
    %206 = vperm.xlu0 %205, %v201
    %v207 = vpop.permute.xlu0 %206
    %v210 = vlaneseq
    %v211 = vshrl.u32 %v210, 7
    %v212 = vsub.s32 0, %v211
    %v213 = vrot.slane %v203, %v212
    %v214 = vlaneseq
    %v215 = vshrl.u32 %v214, 7
    %v216 = vsub.s32 1, %v215
    %v217 = vrot.slane %v203, %v216
    %v220 = vmul.f32 %v207, %v213
    %v221 = vmul.f32 %v207, %v217
    %v222 = vadd.f32 %v173, %v220
    %v223 = vadd.f32 %v174, %v221
    %s224 = scalar_lea.vmem %s4, 3
    %v225 = vld [vmem:[%s224] ss:$8 sm:$0x3]
    %v227 = vlaneseq
    %v228 = vshrl.u32 %v227, 7
    %v229 = vsub.s32 0, %v228
    %v230 = vrot.slane %v225, %v229
    %v231 = vlaneseq
    %v232 = vshrl.u32 %v231, 7
    %v233 = vsub.s32 1, %v232
    %v234 = vrot.slane %v225, %v233
    %v237 = vmul.f32 %v207, %v230
    %v238 = vmul.f32 %v207, %v234
    %v239 = vadd.f32 %v190, %v237
    %v240 = vadd.f32 %v191, %v238
    %v241 = vld [vmem:[%s5 + $0x3] sm:$0x1]
    %v242 = vlaneseq
    %v243 = vshrl.u32 %v242, 7
    %v244 = vsub.s32 0, %v243
    %v245 = vrot.slane %v241, %v244
    %v246 = vmul.f32 %v201, %v245
    %v247 = vadd.f32 %v198, %v246
    %vm248 = vcmp.eq.s32.totalorder %v53, 4
    %v249 = vsel %vm248, 1, 0
    %v250 = vcvt.s32.f32 %v249
    %s251 = scalar_lea.vmem [#allocation4], 4
    %v252 = vld [vmem:[%s251] ss:$8 sm:$0x3]
    %254 = vset.pattern.permute.xlu0 0
    %255 = vperm.xlu0 %254, %v250
    %v256 = vpop.permute.xlu0 %255
    %v259 = vlaneseq
    %v260 = vshrl.u32 %v259, 7
    %v261 = vsub.s32 0, %v260
    %v262 = vrot.slane %v252, %v261
    %v263 = vlaneseq
    %v264 = vshrl.u32 %v263, 7
    %v265 = vsub.s32 1, %v264
    %v266 = vrot.slane %v252, %v265
    %v269 = vmul.f32 %v256, %v262
    %v270 = vmul.f32 %v256, %v266
    %v271 = vadd.f32 %v222, %v269
    %v272 = vadd.f32 %v223, %v270
    %s273 = scalar_lea.vmem %s4, 4
    %v274 = vld [vmem:[%s273] ss:$8 sm:$0x3]
    %v276 = vlaneseq
    %v277 = vshrl.u32 %v276, 7
    %v278 = vsub.s32 0, %v277
    %v279 = vrot.slane %v274, %v278
    %v280 = vlaneseq
    %v281 = vshrl.u32 %v280, 7
    %v282 = vsub.s32 1, %v281
    %v283 = vrot.slane %v274, %v282
    %v286 = vmul.f32 %v256, %v279
    %v287 = vmul.f32 %v256, %v283
    %v288 = vadd.f32 %v239, %v286
    %v289 = vadd.f32 %v240, %v287
    %v290 = vld [vmem:[%s5 + $0x4] sm:$0x1]
    %v291 = vlaneseq
    %v292 = vshrl.u32 %v291, 7
    %v293 = vsub.s32 0, %v292
    %v294 = vrot.slane %v290, %v293
    %v295 = vmul.f32 %v250, %v294
    %v296 = vadd.f32 %v247, %v295
    %vm297 = vcmask 998400
    %v298 = vsel %vm297, %v52, -inf
    %v299 = vmax.f32 %v51, %v298
    %300 = vmax.xlane.f32.xlu0 %v299
    %v301 = vpop.xlane.xlu0 %300
    %v302 = vsub.f32 %v51, %v301
    %v303 = vsub.f32 %v52, %v301
    %v304 = vmul.f32 %v302, 1.442695
    %v305 = vpow.pop %v304
    %v306 = vmul.f32 %v303, 1.442695
    %v307 = vpow.pop %v306
    %v308 = vsel %vm297, %v307, 0.0
    %v309 = vadd.f32 %v305, %v308
    %310 = vadd.xlane.f32.xlu0 %v309
    %v311 = vpop.xlane.xlu0 %310
    %v312 = vlog2.pop %v311
    %v313 = vmul.f32 %v312, 0.6931472
    %v314 = vsub.f32 %v302, %v313
    %v315 = vsub.f32 %v303, %v313
    %v316 = vsub.f32 0.0, %v314
    %v317 = vsub.f32 0.0, %v315
    %v318 = vmul.f32 %v316, %v271
    %v319 = vmul.f32 %v317, %v272
    %v320 = vsel %vm297, %v319, 0.0
    %v321 = vadd.f32 %v318, %v320
    %322 = vadd.xlane.f32.xlu0 %v321
    %v323 = vpop.xlane.xlu0 %322
    %vm324 = vcmask 7168
    %325 = vst.msk [vmem:[%s6] sm:$0xff] %vm324, %v323
    %v326 = vand.u32 2147483647, %v51
    %v327 = vand.u32 2147483647, %v52
    %v328 = vsub.f32 0.0, %v326
    %v329 = vsub.f32 0.0, %v327
    %v330 = vmul.f32 %v328, 1.442695
    %v331 = vpow.pop %v330
    %v332 = vmul.f32 %v329, 1.442695
    %v333 = vpow.pop %v332
    %vm334 = vcmp.ge.f32.partialorder %v51, 0.0
    %vm335 = vcmp.ge.f32.partialorder %v52, 0.0
    %v336 = vadd.f32 %v331, 1.0
    %v337 = vadd.f32 %v333, 1.0
    %v338 = vrcp.pop %v336
    %v339 = vmul.f32 1.0, %v338
    %v340 = vrcp.pop %v337
    %v341 = vmul.f32 1.0, %v340
    %v342 = vmul.f32 %v331, %v338
    %v343 = vmul.f32 %v333, %v340
    %v344 = vsel %vm334, %v339, %v342
    %v345 = vsel %vm335, %v341, %v343
    %v346 = vsel %vm297, %v345, 0.0
    %v347 = vadd.f32 %v344, %v346
    %348 = vadd.xlane.f32.xlu0 %v347
    %v349 = vpop.xlane.xlu0 %348
    %v350 = vrcp.pop %v349
    %v351 = vmul.f32 %v344, %v350
    %v352 = vmul.f32 %v345, %v350
    %v353 = vld [vmem:[#allocation2] sm:$0xff]
    %v354 = vld [vmem:[#allocation2 + $0x8] sm:$0xff]
    %v355 = vld [vmem:[#allocation2 + $0x10] sm:$0xff]
    %v356 = vld [vmem:[#allocation2 + $0x18] sm:$0xff]
    %v357 = vld [vmem:[#allocation2 + $0x20] sm:$0xff]
    %v358 = vld [vmem:[#allocation2 + $0x28] sm:$0xff]
    %v359 = vld [vmem:[#allocation2 + $0x30] sm:$0xff]
    %v360 = vld [vmem:[#allocation2 + $0x38] sm:$0xff]
    %v361 = vld [vmem:[#allocation2 + $0x40] sm:$0xff]
    %v362 = vld [vmem:[#allocation2 + $0x48] sm:$0xff]
    %v363 = vld [vmem:[#allocation2 + $0x50] sm:$0xff]
    %v364 = vld [vmem:[#allocation2 + $0x58] sm:$0xff]
    %v365 = vld [vmem:[#allocation2 + $0x60] sm:$0xff]
    %v366 = vld [vmem:[#allocation2 + $0x68] sm:$0xff]
    %v367 = vld [vmem:[#allocation2 + $0x70] sm:$0xff]
    %v368 = vld [vmem:[#allocation2 + $0x78] sm:$0xff]
    %v369 = vld [vmem:[#allocation2 + $0x80] sm:$0xff]
    %v370 = vld [vmem:[#allocation2 + $0x88] sm:$0xff]
    %v371 = vld [vmem:[#allocation2 + $0x90] sm:$0xff]
    %v372 = vld [vmem:[#allocation2 + $0x98] sm:$0xff]
    %v373 = vld [vmem:[#allocation2 + $0xa0] sm:$0xff]
    %v374 = vld [vmem:[#allocation2 + $0xa8] sm:$0xff]
    %v375 = vld [vmem:[#allocation2 + $0xb0] sm:$0xff]
    %v376 = vld [vmem:[#allocation2 + $0xb8] sm:$0xff]
    %v377 = vld [vmem:[#allocation2 + $0xc0] sm:$0xff]
    %v378 = vld [vmem:[#allocation2 + $0xc8] sm:$0xff]
    %v379 = vld [vmem:[#allocation2 + $0xd0] sm:$0xff]
    %v380 = vld [vmem:[#allocation2 + $0xd8] sm:$0xff]
    %v381 = vld [vmem:[#allocation2 + $0xe0] sm:$0xff]
    %v382 = vld [vmem:[#allocation2 + $0xe8] sm:$0xff]
    %v383 = vld [vmem:[#allocation2 + $0xf0] sm:$0xff]
    %v384 = vld [vmem:[#allocation2 + $0xf8] sm:$0xff]
    %v385 = vld [vmem:[#allocation2 + $0x100] sm:$0xff]
    %v386 = vld [vmem:[#allocation2 + $0x108] sm:$0xff]
    %v387 = vld [vmem:[#allocation2 + $0x110] sm:$0xff]
    %v388 = vld [vmem:[#allocation2 + $0x118] sm:$0xff]
    %v389 = vld [vmem:[#allocation2 + $0x120] sm:$0xff]
    %v390 = vld [vmem:[#allocation2 + $0x128] sm:$0xff]
    %v391 = vld [vmem:[#allocation2 + $0x130] sm:$0xff]
    %v392 = vld [vmem:[#allocation2 + $0x138] sm:$0xff]
    %v393 = vld [vmem:[#allocation2 + $0x140] sm:$0xff]
    %v394 = vld [vmem:[#allocation2 + $0x148] sm:$0xff]
    %v395 = vld [vmem:[#allocation2 + $0x150] sm:$0xff]
    %v396 = vld [vmem:[#allocation2 + $0x158] sm:$0xff]
    %v397 = vld [vmem:[#allocation2 + $0x160] sm:$0xff]
    %v398 = vld [vmem:[#allocation2 + $0x168] sm:$0xff]
    %v399 = vld [vmem:[#allocation2 + $0x170] sm:$0xff]
    %v400 = vld [vmem:[#allocation2 + $0x178] sm:$0xff]
    %v401 = vld [vmem:[#allocation2 + $0x180] sm:$0xff]
    %v402 = vld [vmem:[#allocation2 + $0x188] sm:$0xff]
    %v403 = vld [vmem:[#allocation2 + $0x190] sm:$0xff]
    %v404 = vld [vmem:[#allocation2 + $0x198] sm:$0xff]
    %v405 = vld [vmem:[#allocation2 + $0x1a0] sm:$0xff]
    %v406 = vld [vmem:[#allocation2 + $0x1a8] sm:$0xff]
    %v407 = vld [vmem:[#allocation2 + $0x1b0] sm:$0xff]
    %v408 = vld [vmem:[#allocation2 + $0x1b8] sm:$0xff]
    %v409 = vld [vmem:[#allocation2 + $0x1c0] sm:$0xff]
    %v410 = vld [vmem:[#allocation2 + $0x1c8] sm:$0xff]
    %v411 = vld [vmem:[#allocation2 + $0x1d0] sm:$0xff]
    %v412 = vld [vmem:[#allocation2 + $0x1d8] sm:$0xff]
    %v413 = vld [vmem:[#allocation2 + $0x1e0] sm:$0xff]
    %v414 = vld [vmem:[#allocation2 + $0x1e8] sm:$0xff]
    %v415 = vld [vmem:[#allocation2 + $0x1f0] sm:$0x3]
    %v416 = vld [vmem:[#allocation2 + $0x1f8] sm:$0x3]
    %v418 = vsel %vm297, %v352, 0
    %vm420 = vcmask 1041408
    %v422 = vsel %vm420, %v415, 0
    %v425 = vsel %vm420, %v416, 0
    %427 = vmatprep.subr.mxu0 %v354
    %428 = vmatpush1.msra.mxu0 %v353
    %429 = vmatprep.subr.mxu0 %v356
    %430 = vmatpush1.msra.mxu0 %v355
    %431 = vmatprep.subr.mxu0 %v358
    %432 = vmatpush1.msra.mxu0 %v357
    %433 = vmatprep.subr.mxu0 %v360
    %434 = vmatpush1.msra.mxu0 %v359
    %435 = vmatprep.subr.mxu0 %v362
    %436 = vmatpush1.msra.mxu0 %v361
    %437 = vmatprep.subr.mxu0 %v364
    %438 = vmatpush1.msra.mxu0 %v363
    %439 = vmatprep.subr.mxu0 %v366
    %440 = vmatpush1.msra.mxu0 %v365
    %441 = vmatprep.subr.mxu0 %v368
    %442 = vmatpush1.msra.mxu0 %v367
    %443 = vmatprep.subr.mxu0 %v370
    %444 = vmatpush1.msra.mxu0 %v369
    %445 = vmatprep.subr.mxu0 %v372
    %446 = vmatpush1.msra.mxu0 %v371
    %447 = vmatprep.subr.mxu0 %v374
    %448 = vmatpush1.msra.mxu0 %v373
    %449 = vmatprep.subr.mxu0 %v376
    %450 = vmatpush1.msra.mxu0 %v375
    %451 = vmatprep.subr.mxu0 %v378
    %452 = vmatpush1.msra.mxu0 %v377
    %453 = vmatprep.subr.mxu0 %v380
    %454 = vmatpush1.msra.mxu0 %v379
    %455 = vmatprep.subr.mxu0 %v382
    %456 = vmatpush1.msra.mxu0 %v381
    %457 = vmatprep.subr.mxu0 %v384
    %458 = vmatpush1.msra.mxu0 %v383
    %459 = vmatprep.subr.mxu0 %v386
    %460 = vmatpush1.msra.mxu0 %v385
    %461 = vmatprep.subr.mxu0 %v388
    %462 = vmatpush1.msra.mxu0 %v387
    %463 = vmatprep.subr.mxu0 %v390
    %464 = vmatpush1.msra.mxu0 %v389
    %465 = vmatprep.subr.mxu0 %v392
    %466 = vmatpush1.msra.mxu0 %v391
    %467 = vmatprep.subr.mxu0 %v394
    %468 = vmatpush1.msra.mxu0 %v393
    %469 = vmatprep.subr.mxu0 %v396
    %470 = vmatpush1.msra.mxu0 %v395
    %471 = vmatprep.subr.mxu0 %v398
    %472 = vmatpush1.msra.mxu0 %v397
    %473 = vmatprep.subr.mxu0 %v400
    %474 = vmatpush1.msra.mxu0 %v399
    %475 = vmatprep.subr.mxu0 %v402
    %476 = vmatpush1.msra.mxu0 %v401
    %477 = vmatprep.subr.mxu0 %v404
    %478 = vmatpush1.msra.mxu0 %v403
    %479 = vmatprep.subr.mxu0 %v406
    %480 = vmatpush1.msra.mxu0 %v405
    %481 = vmatprep.subr.mxu0 %v408
    %482 = vmatpush1.msra.mxu0 %v407
    %483 = vmatprep.subr.mxu0 %v410
    %484 = vmatpush1.msra.mxu0 %v409
    %485 = vmatprep.subr.mxu0 %v412
    %486 = vmatpush1.msra.mxu0 %v411
    %487 = vmatprep.subr.mxu0 %v414
    %488 = vmatpush1.msra.mxu0 %v413
    %489 = vmatprep.subr.mxu0 %v425
    %490 = vmatpush1.msra.mxu0 %v422
    %491 = vmatprep.mubr.f32.mxu0 %v418
    %492 = vmatmul.mubr.f32.gmra.mrb[0].mxu0 %v351
    %v493 = vpop.f32.mrb[0].mxu0
    %v494 = vadd.f32 0.0, %v493
    %v495 = vpop.f32.mrb[0].mxu0
    %v496 = vadd.f32 0.0, %v495
    %497 = vdwg.mxu0
    %v498 = vmax.f32 %v494, 0.0
    %v499 = vmax.f32 %v496, 0.0
    %v500 = vmin.f32 %v498, 1.0
    %v501 = vmin.f32 %v499, 1.0
    %v502 = vmul.f32 %v500, %v288
    %v503 = vmul.f32 %v501, %v289
    %v504 = vsel %vm297, %v503, 0.0
    %v505 = vadd.f32 %v502, %v504
    %506 = vadd.xlane.f32.xlu0 %v505
    %v507 = vpop.xlane.xlu0 %506
    %v508 = vmul.f32 %v500, %v500
    %v509 = vmul.f32 %v501, %v501
    %v510 = vsel %vm297, %v509, 0.0
    %v511 = vadd.f32 %v508, %v510
    %512 = vadd.xlane.f32.xlu0 %v511
    %v513 = vpop.xlane.xlu0 %512
    %v514 = vadd.f32 %v513, %v296
    %v515 = vmul.f32 %v507, 2.0
    %v516 = vrcp.pop %v514
    %v517 = vmul.f32 %v515, %v516
    %v518 = vsub.f32 1.0, %v517
    %519 = vst.msk [vmem:[%s7] sm:$0xff] %vm324, %v518
    // Predicated region
    $region34: #{tpu_custom_call.1} parent=1 // pred_check
      _
    $region35: #{tpu_custom_call.1} parent=1 // pred_check_branch
      %521 = sbr.rel (0) target = $region37
    $region36: #{tpu_custom_call.1} parent=1 // pred_region
      _
    $region37: #{tpu_custom_call.1} parent=1 // pred_fallthru
      _
    // Predicated region
    $region38: #{tpu_custom_call.1} parent=1 // pred_check
      _
    $region39: #{tpu_custom_call.1} parent=1 // pred_check_branch
      %523 = sbr.rel (0) target = $region41
    $region40: #{tpu_custom_call.1} parent=1 // pred_region
      _
    $region41: #{tpu_custom_call.1} parent=1 // pred_fallthru
      _
    // Predicated region
    $region42: #{tpu_custom_call.1} parent=1 // pred_check
      _
    $region43: #{tpu_custom_call.1} parent=1 // pred_check_branch
      %525 = sbr.rel (0) target = $region45
    $region44: #{tpu_custom_call.1} parent=1 // pred_region
      _
    $region45: #{tpu_custom_call.1} parent=1 // pred_fallthru
      _
    // Predicated region
    $region46: #{tpu_custom_call.1} parent=1 // pred_check
      _
    $region47: #{tpu_custom_call.1} parent=1 // pred_check_branch
      %527 = sbr.rel (0) target = $region49
    $region48: #{tpu_custom_call.1} parent=1 // pred_region
      _
    $region49: #{tpu_custom_call.1} parent=1 // pred_fallthru
      _
    %528 = vsyncpa [#allocation3], 1
    %529 = vsyncpa [#allocation5], 1

</llo_original>
